<compile_context>
chip_gen: v7x
topology: tpu7x:2x2x1
jax: 0.10.0
libtpu: 0.0.40
codegen_flags: <defaults>
</compile_context>

<pallas_src>
import jax
import jax.numpy as jnp
from jax.experimental import pallas as pl
from jax.experimental.pallas import tpu as pltpu


def dblock_gcn_kernel(x_ref, adj_ref, w12_ref, b12_ref, wmo_ref, bmo_ref, out_ref):
    """One grid step = one graph of the batch.

    x_ref   : (N, F)     node features (batch dim squeezed away)
    adj_ref : (N, N)     dense adjacency
    w12_ref : (F, 2H)    [W_gc1 | W_gc2]
    b12_ref : (1, 2H)    [b_gc1 | b_gc2]
    wmo_ref : (2H, 2O)   [[W_mu | W_logsigma], [0 | 0]]   (zero-padded rows)
    bmo_ref : (1, 2O)    [b_mu | b_logsigma]
    out_ref : (N, 2O)    [mu | logsigma]  (lane-dense combined output)
    """
    x = x_ref[...]
    adj = adj_ref[...]
    H = w12_ref.shape[1] // 2

    # --- gc1 & gc2 fused, reassociated:  ((adj @ x) @ [W1|W2]) + [b1|b2]
    # adj @ (x @ W) == (adj @ x) @ W, but the intermediate is (N, F) not (N, 2H).
    ax = jnp.dot(adj, x, preferred_element_type=jnp.float32)                 # (N, F)
    g = jnp.dot(ax, w12_ref[...], preferred_element_type=jnp.float32) \
        + b12_ref[...]                                                        # (N, 2H)

    # --- t = tanh(g1) * sigmoid(g2) with ONE transcendental pass and no
    #     sub-vreg lane slices. sigmoid(z) = 0.5*tanh(z/2) + 0.5, so:
    #       lanes [0,H)  : tanh(g)
    #       lanes [H,2H) : 0.5*tanh(0.5*g) + 0.5  == sigmoid(g)
    lane = jax.lax.broadcasted_iota(jnp.int32, g.shape, dimension=1)
    is_tanh = lane < H
    th = jnp.tanh(jnp.where(is_tanh, g, 0.5 * g))
    act = jnp.where(is_tanh, th, 0.5 * th + 0.5)
    # Multiply by the half-swapped copy (XLU roll): both halves now equal t.
    t_full = act * pltpu.roll(act, shift=H, axis=1)                           # (N, 2H)

    # --- gc_mu & gc_logsigma fused: adj @ (t_full @ [[Wmu|Wls],[0|0]]) + [bmu|bls]
    # The zero bottom rows of wmo kill the duplicated second half of t_full.
    s2 = jnp.dot(t_full, wmo_ref[...], preferred_element_type=jnp.float32)    # (N, 2O)
    out_ref[...] = (jnp.dot(adj, s2, preferred_element_type=jnp.float32)
                    + bmo_ref[...])


def fuse_params(params):
    """Hoisted out of the forward path: build the fused/padded weights ONCE."""
    H = params["gc1_w"].shape[1]
    O = params["gcmu_w"].shape[1]
    w12 = jnp.concatenate([params["gc1_w"], params["gc2_w"]], axis=1)          # (F, 2H)
    b12 = jnp.concatenate([params["gc1_b"], params["gc2_b"]], axis=1)          # (1, 2H)
    wmo = jnp.concatenate(
        [jnp.concatenate([params["gcmu_w"], params["gcls_w"]], axis=1),
         jnp.zeros((H, 2 * O), jnp.float32)], axis=0)                          # (2H, 2O)
    bmo = jnp.concatenate([params["gcmu_b"], params["gcls_b"]], axis=1)        # (1, 2O)
    return {"w12": w12, "b12": b12, "wmo": wmo, "bmo": bmo}


def dblock_gcn_forward(x, adj, fused):
    """Batched forward. x: (N,F) or (B,N,F); adj: (N,N) or (B,N,N)."""
    single = x.ndim == 2
    if single:
        x, adj = x[None], adj[None]
    B, N, F = x.shape
    twoH = fused["w12"].shape[1]
    twoO = fused["bmo"].shape[1]
    O = twoO // 2

    out = pl.pallas_call(
        dblock_gcn_kernel,
        out_shape=jax.ShapeDtypeStruct((B, N, twoO), jnp.float32),
        grid=(B,),
        in_specs=[
            pl.BlockSpec((None, N, F), lambda b: (b, 0, 0)),     # x: per-graph tile
            pl.BlockSpec((None, N, N), lambda b: (b, 0, 0)),     # adj: per-graph tile
            pl.BlockSpec((F, twoH), lambda b: (0, 0)),           # weights stay resident
            pl.BlockSpec((1, twoH), lambda b: (0, 0)),
            pl.BlockSpec((twoH, twoO), lambda b: (0, 0)),
            pl.BlockSpec((1, twoO), lambda b: (0, 0)),
        ],
        out_specs=pl.BlockSpec((None, N, twoO), lambda b: (b, 0, 0)),
        compiler_params=pltpu.CompilerParams(
            dimension_semantics=("parallel",)),                   # megacore / v7x 2-TC
    )(x, adj, fused["w12"], fused["b12"], fused["wmo"], fused["bmo"])

    # Module signature requires (mu, logsigma); consumers that can take the
    # fused (N, 2O) slab should skip this split.
    mu, logsigma = out[..., :O], out[..., O:]
    if single:
        mu, logsigma = mu[0], logsigma[0]
    return mu, logsigma


def ref_forward(x, adj, p):
    """Pure-JAX reference with the original module semantics (per graph)."""
    def gcn(h, w, b):
        return adj @ (h @ w) + b

    t = jnp.tanh(gcn(x, p["gc1_w"], p["gc1_b"])) * \
        jax.nn.sigmoid(gcn(x, p["gc2_w"], p["gc2_b"]))
    mu = gcn(t, p["gcmu_w"], p["gcmu_b"])
    logsigma = gcn(t, p["gcls_w"], p["gcls_b"])
    return mu, logsigma


def init_params(key, input_size, hidden_size, output_size):
    ks = jax.random.split(key, 8)

    def w(k, shape, scale=0.1):
        return (scale * jax.random.normal(k, shape)).astype(jnp.float32)

    return {
        "gc1_w": w(ks[0], (input_size, hidden_size)),
        "gc1_b": w(ks[1], (1, hidden_size)),
        "gc2_w": w(ks[2], (input_size, hidden_size)),
        "gc2_b": w(ks[3], (1, hidden_size)),
        "gcmu_w": w(ks[4], (hidden_size, output_size)),
        "gcmu_b": w(ks[5], (1, output_size)),
        "gcls_w": w(ks[6], (hidden_size, output_size)),
        "gcls_b": w(ks[7], (1, output_size)),
    }


if __name__ == "__main__":
    # Small shapes consistent with the module; H = O = 64 so the fused
    # intermediates / combined output are exactly 128 lanes wide (lane-dense).
    batch = 4           # B graphs per call (amortizes launch / weight DMA)
    node_num = 8        # N
    input_size = 16     # F
    hidden_size = 64    # H
    output_size = 64    # O

    key = jax.random.PRNGKey(0)
    k_adj, k_x, k_p = jax.random.split(key, 3)

    # symmetric dense adjacencies with self loops
    a = jax.random.uniform(k_adj, (batch, node_num, node_num))
    adj = ((a + jnp.swapaxes(a, -1, -2)) * 0.5
           + jnp.eye(node_num)[None]).astype(jnp.float32)
    x = jax.random.normal(k_x, (batch, node_num, input_size), jnp.float32)

    params = init_params(k_p, input_size, hidden_size, output_size)
    fused = fuse_params(params)          # hoisted: once per model, not per call

    fwd = jax.jit(dblock_gcn_forward)

    # batched path
    mu, logsigma = fwd(x, adj, fused)
    jax.block_until_ready((mu, logsigma))

    mu_ref, ls_ref = jax.vmap(lambda xi, ai: ref_forward(xi, ai, params))(x, adj)
    assert jnp.allclose(mu, mu_ref, atol=2e-5, rtol=2e-5)
    assert jnp.allclose(logsigma, ls_ref, atol=2e-5, rtol=2e-5)

    # single-graph path (original module signature)
    mu1, ls1 = fwd(x[0], adj[0], fused)
    jax.block_until_ready((mu1, ls1))
    assert jnp.allclose(mu1, mu_ref[0], atol=2e-5, rtol=2e-5)
    assert jnp.allclose(ls1, ls_ref[0], atol=2e-5, rtol=2e-5)

    # TODO(synk): optionally cast w12/wmo to bf16 on v6e/v7x once accuracy vs
    # the f32 reference is re-validated (halves the largest weight DMA).
    print("KERNEL_OK")
</pallas_src>

<mosaic_0001>
module attributes {stable_mosaic.version = 11 : i64} {
  func.func @dblock_gcn_kernel(%arg0: i32, %arg1: memref<1x8x16xf32, #tpu.memory_space<vmem>>, %arg2: memref<1x8x8xf32, #tpu.memory_space<vmem>>, %arg3: memref<16x128xf32, #tpu.memory_space<vmem>>, %arg4: memref<1x128xf32, #tpu.memory_space<vmem>>, %arg5: memref<128x128xf32, #tpu.memory_space<vmem>>, %arg6: memref<1x128xf32, #tpu.memory_space<vmem>>, %arg7: memref<1x8x128xf32, #tpu.memory_space<vmem>>) attributes {dimension_semantics = [#tpu.dimension_semantics<parallel>], iteration_bounds = array<i64: 4>, scalar_prefetch = 0 : i64, scratch_operands = 0 : i64, tpu.core_type = #tpu.core_type<tc>, window_params = [{transform_indices = @transform_0, window_bounds = array<i64: 1, 8, 16>}, {transform_indices = @transform_1, window_bounds = array<i64: 1, 8, 8>}, {pipeline_mode = #tpu.pipeline_mode<synchronous>, transform_indices = @transform_2, window_bounds = array<i64: 16, 128>}, {pipeline_mode = #tpu.pipeline_mode<synchronous>, transform_indices = @transform_3, window_bounds = array<i64: 1, 128>}, {pipeline_mode = #tpu.pipeline_mode<synchronous>, transform_indices = @transform_4, window_bounds = array<i64: 128, 128>}, {pipeline_mode = #tpu.pipeline_mode<synchronous>, transform_indices = @transform_5, window_bounds = array<i64: 1, 128>}, {transform_indices = @transform_6, window_bounds = array<i64: 1, 8, 128>}]} {
    %c0 = arith.constant 0 : index
    %c0_0 = arith.constant 0 : index
    %c0_1 = arith.constant 0 : index
    %0 = vector.load %arg1[%c0, %c0_0, %c0_1] : memref<1x8x16xf32, #tpu.memory_space<vmem>>, vector<1x8x16xf32>
    %1 = vector.shape_cast %0 : vector<1x8x16xf32> to vector<8x16xf32>
    %c0_2 = arith.constant 0 : index
    %c0_3 = arith.constant 0 : index
    %c0_4 = arith.constant 0 : index
    %2 = vector.load %arg2[%c0_2, %c0_3, %c0_4] : memref<1x8x8xf32, #tpu.memory_space<vmem>>, vector<1x8x8xf32>
    %3 = vector.shape_cast %2 : vector<1x8x8xf32> to vector<8x8xf32>
    %cst = arith.constant dense<0.000000e+00> : vector<8x16xf32>
    %4 = tpu.matmul %3, %1, %cst {dimension_numbers = #tpu.dot_dimension_numbers<[1], [0], [0], [1], [0, 0, 1, 1], [], []>} : vector<8x8xf32>, vector<8x16xf32>, vector<8x16xf32> -> vector<8x16xf32>
    %c0_5 = arith.constant 0 : index
    %c0_6 = arith.constant 0 : index
    %5 = vector.load %arg3[%c0_5, %c0_6] : memref<16x128xf32, #tpu.memory_space<vmem>>, vector<16x128xf32>
    %cst_7 = arith.constant dense<0.000000e+00> : vector<8x128xf32>
    %6 = tpu.matmul %4, %5, %cst_7 {dimension_numbers = #tpu.dot_dimension_numbers<[1], [0], [0], [1], [0, 0, 1, 1], [], []>} : vector<8x16xf32>, vector<16x128xf32>, vector<8x128xf32> -> vector<8x128xf32>
    %c0_8 = arith.constant 0 : index
    %c0_9 = arith.constant 0 : index
    %7 = vector.load %arg4[%c0_8, %c0_9] : memref<1x128xf32, #tpu.memory_space<vmem>>, vector<1x128xf32>
    %8 = vector.broadcast %7 : vector<1x128xf32> to vector<8x128xf32>
    %9 = arith.addf %6, %8 : vector<8x128xf32>
    %10 = tpu.iota {dimensions = array<i32: 1>} : vector<8x128xi32>
    %c64_i32 = arith.constant 64 : i32
    %11 = vector.broadcast %c64_i32 : i32 to vector<8x128xi32>
    %12 = arith.cmpi slt, %10, %11 : vector<8x128xi32>
    %cst_10 = arith.constant 5.000000e-01 : f32
    %13 = vector.broadcast %cst_10 : f32 to vector<8x128xf32>
    %14 = arith.mulf %13, %9 : vector<8x128xf32>
    %15 = arith.select %12, %9, %14 : vector<8x128xi1>, vector<8x128xf32>
    %16 = math.tanh %15 : vector<8x128xf32>
    %cst_11 = arith.constant 5.000000e-01 : f32
    %17 = vector.broadcast %cst_11 : f32 to vector<8x128xf32>
    %18 = arith.mulf %17, %16 : vector<8x128xf32>
    %cst_12 = arith.constant 5.000000e-01 : f32
    %19 = vector.broadcast %cst_12 : f32 to vector<8x128xf32>
    %20 = arith.addf %18, %19 : vector<8x128xf32>
    %21 = arith.select %12, %16, %20 : vector<8x128xi1>, vector<8x128xf32>
    %c64_i32_13 = arith.constant 64 : i32
    %22 = tpu.dynamic_rotate %21 by %c64_i32_13 dim 1 : vector<8x128xf32>, i32 -> vector<8x128xf32>
    %23 = arith.mulf %21, %22 : vector<8x128xf32>
    %c0_14 = arith.constant 0 : index
    %c0_15 = arith.constant 0 : index
    %24 = vector.load %arg5[%c0_14, %c0_15] : memref<128x128xf32, #tpu.memory_space<vmem>>, vector<128x128xf32>
    %cst_16 = arith.constant dense<0.000000e+00> : vector<8x128xf32>
    %25 = tpu.matmul %23, %24, %cst_16 {dimension_numbers = #tpu.dot_dimension_numbers<[1], [0], [0], [1], [0, 0, 1, 1], [], []>} : vector<8x128xf32>, vector<128x128xf32>, vector<8x128xf32> -> vector<8x128xf32>
    %cst_17 = arith.constant dense<0.000000e+00> : vector<8x128xf32>
    %26 = tpu.matmul %3, %25, %cst_17 {dimension_numbers = #tpu.dot_dimension_numbers<[1], [0], [0], [1], [0, 0, 1, 1], [], []>} : vector<8x8xf32>, vector<8x128xf32>, vector<8x128xf32> -> vector<8x128xf32>
    %c0_18 = arith.constant 0 : index
    %c0_19 = arith.constant 0 : index
    %27 = vector.load %arg6[%c0_18, %c0_19] : memref<1x128xf32, #tpu.memory_space<vmem>>, vector<1x128xf32>
    %28 = vector.broadcast %27 : vector<1x128xf32> to vector<8x128xf32>
    %29 = arith.addf %26, %28 : vector<8x128xf32>
    %c0_20 = arith.constant 0 : index
    %c0_21 = arith.constant 0 : index
    %c0_22 = arith.constant 0 : index
    %30 = vector.load %arg7[%c0_20, %c0_21, %c0_22] : memref<1x8x128xf32, #tpu.memory_space<vmem>>, vector<1x8x128xf32>
    %31 = vector.shape_cast %30 : vector<1x8x128xf32> to vector<8x128xf32>
    %32 = vector.shape_cast %29 : vector<8x128xf32> to vector<1x8x128xf32>
    tpu.vector_store %arg7[%c0_20, %c0_21, %c0_22], %32 {strides = array<i32>} : memref<1x8x128xf32, #tpu.memory_space<vmem>>, vector<1x8x128xf32>,
    return
  }
  func.func @transform_0(%arg0: i32) -> (i32, i32, i32) {
    %c0_i32 = arith.constant 0 : i32
    %c0_i32_0 = arith.constant 0 : i32
    %c0_i32_1 = arith.constant 0 : i32
    return %arg0, %c0_i32, %c0_i32_0 : i32, i32, i32
  }
  func.func @transform_1(%arg0: i32) -> (i32, i32, i32) {
    %c0_i32 = arith.constant 0 : i32
    %c0_i32_0 = arith.constant 0 : i32
    %c0_i32_1 = arith.constant 0 : i32
    return %arg0, %c0_i32, %c0_i32_0 : i32, i32, i32
  }
  func.func @transform_2(%arg0: i32) -> (i32, i32) {
    %c0_i32 = arith.constant 0 : i32
    %c0_i32_0 = arith.constant 0 : i32
    %c0_i32_1 = arith.constant 0 : i32
    return %c0_i32, %c0_i32_0 : i32, i32
  }
  func.func @transform_3(%arg0: i32) -> (i32, i32) {
    %c0_i32 = arith.constant 0 : i32
    %c0_i32_0 = arith.constant 0 : i32
    %c0_i32_1 = arith.constant 0 : i32
    return %c0_i32, %c0_i32_0 : i32, i32
  }
  func.func @transform_4(%arg0: i32) -> (i32, i32) {
    %c0_i32 = arith.constant 0 : i32
    %c0_i32_0 = arith.constant 0 : i32
    %c0_i32_1 = arith.constant 0 : i32
    return %c0_i32, %c0_i32_0 : i32, i32
  }
  func.func @transform_5(%arg0: i32) -> (i32, i32) {
    %c0_i32 = arith.constant 0 : i32
    %c0_i32_0 = arith.constant 0 : i32
    %c0_i32_1 = arith.constant 0 : i32
    return %c0_i32, %c0_i32_0 : i32, i32
  }
  func.func @transform_6(%arg0: i32) -> (i32, i32, i32) {
    %c0_i32 = arith.constant 0 : i32
    %c0_i32_0 = arith.constant 0 : i32
    %c0_i32_1 = arith.constant 0 : i32
    return %arg0, %c0_i32, %c0_i32_0 : i32, i32, i32
  }
}

</mosaic_0001>

<llo_original>
// kernel: dblock_gcn_forward.1
$region0: #{dblock_gcn_forward.1}
  #allocation0 [shape = 'u32[]', space=smem, size = 0x4, offset = 0x4, fixed_abs, tag = 'smem constant byte address 0x4 - core index']
  #allocation1 [shape = 'u32[144,128]{1,0:T(1,128)}', space=vmem, size = 0x12000, scoped, tag = 'internal scratch']
  %s0 = inlined_call_operand.hbm [shape: f32[4,8,16], index: 0, kind: input, shape index: {}]
  %s1 = inlined_call_operand.hbm [shape: f32[4,8,8], index: 1, kind: input, shape index: {}]
  %s2 = inlined_call_operand.hbm [shape: f32[16,128], index: 2, kind: input, shape index: {}]
  %s3 = inlined_call_operand.vmem [shape: f32[1,128], index: 3, kind: input, shape index: {}]
  %s4 = inlined_call_operand.hbm [shape: f32[128,128], index: 4, kind: input, shape index: {}]
  %s5 = inlined_call_operand.vmem [shape: f32[1,128], index: 5, kind: input, shape index: {}]
  %s6 = inlined_call_operand.vmem [shape: f32[4,8,128], index: 6, kind: output, shape index: {}]
  %s7 = sld [smem:[#allocation0]]
  $region73: #{dblock_gcn_forward.1} parent=0
    _
  %s9 = ssub.s32 1, %s7
  %s10 = scalar_select 0, %s9, %s7
  $region1: #{dblock_gcn_forward.1} parent=0
    #allocation2 [shape = 'u8[8192]{0}', space=vmem, size = 0x2000, scoped, tag = 'input window, operand 0']
    #allocation3 [shape = 's32[2]{0}', space=sflag, size = 0x8, scoped, tag = 'scoped memory for dblock_gcn_forward.1']
    #allocation4 [shape = 'u8[8192]{0}', space=vmem, size = 0x2000, scoped, tag = 'input window, operand 1']
    #allocation5 [shape = 's32[2]{0}', space=sflag, size = 0x8, scoped, tag = 'scoped memory for dblock_gcn_forward.1']
    #allocation6 [shape = 'u8[8192]{0}', space=vmem, size = 0x2000, scoped, tag = 'input window, operand 2, single buffered']
    #allocation7 [shape = 'u8[65536]{0}', space=vmem, size = 0x10000, scoped, tag = 'input window, operand 4, single buffered']
    #allocation8 [shape = 's32[1]{0}', space=sflag, size = 0x4, scoped, tag = 'scoped memory for dblock_gcn_forward.1']
    %11 = vsyncpa [#allocation3], 0
    %s12 = scalar_lea.sflag [#allocation3], 1
    %13 = vsyncpa %s12, 0
    %14 = vsyncpa [#allocation5], 0
    %s15 = scalar_lea.sflag [#allocation5], 1
    %16 = vsyncpa %s15, 0
    %17 = vsyncpa [#allocation8], 0
    loop: start=0, step=1, limit=6
    $region2: #{dblock_gcn_forward.1} parent=1 // loop_pre_header
      _
    $region3: #{dblock_gcn_forward.1} parent=1 // loop_header
      %s19 = sphi 0, %s23
      %p20 = scmp.ge.s32.totalorder %s19, 6
      %s29 = sphi 0, %s31
      %s32 = sphi 0, %s29
      %s33 = sphi 0, %s32
      %s49 = sphi 0, %s33
      %s55 = sphi 0, %s57
      %s58 = sphi 0, %s55
      %s59 = sphi 0, %s58
      %s75 = sphi 0, %s59
      %s79 = sphi 0, %s79
      %s81 = sphi 0, %s79
      %s82 = sphi 0, %s81
      %s96 = sphi 0, %s82
      %s100 = sphi 0, %s100
      %s102 = sphi 0, %s100
      %s103 = sphi 0, %s102
      %s117 = sphi 0, %s103
      %s121 = sphi 0, %s121
      %s123 = sphi 0, %s121
      %s124 = sphi 0, %s123
      %s138 = sphi 0, %s124
      %s142 = sphi 0, %s142
      %s144 = sphi 0, %s142
      %s145 = sphi 0, %s144
      %s159 = sphi 0, %s145
      %s165 = sphi 0, %s167
      %s168 = sphi 0, %s165
      %s169 = sphi 0, %s168
      %s185 = sphi 0, %s169
    $region4: #{dblock_gcn_forward.1} parent=1 // loop_header_branch
      %22 = sbr.rel (%p20) target = $region8
    $region5: #{dblock_gcn_forward.1} parent=1 // loop_body
      %s24 = ssub.s32 %s19, 1
      %s25 = ssub.s32 %s19, 2
      %s26 = sadd.s32 %s19, 1
      %s27 = ssub.s32 %s19, %s26
      %p28 = scmp.eq.s32.totalorder %s27, 0
      %s30 = sadd.s32 %s29, 1
      %s31 = scalar_select %p28, %s29, %s30
      %p34 = pneg %p28
      %p35 = scmp.eq.s32.totalorder %s19, 3
      %p36 = por %p34, %p35
      %p37 = scmp.ne.s32.totalorder %s29, %s32
      %p38 = scmp.eq.s32.totalorder %s19, 0
      %p39 = por %p37, %p38
      %p40 = scmp.ne.s32.totalorder %s29, %s32
      %p41 = scmp.eq.s32.totalorder %s24, 3
      %p42 = por %p40, %p41
      %p43 = scmp.ne.s32.totalorder %s32, %s33
      %p44 = scmp.eq.s32.totalorder %s24, 0
      %p45 = por %p43, %p44
      %p46 = scmp.ne.s32.totalorder %s32, %s33
      %p47 = scmp.eq.s32.totalorder %s25, 3
      %p48 = por %p46, %p47
      %p50 = scmp.ne.s32.totalorder %s33, %s49
      %p51 = scmp.eq.s32.totalorder %s25, 0
      %p52 = por %p50, %p51
      %s53 = ssub.s32 %s19, %s26
      %p54 = scmp.eq.s32.totalorder %s53, 0
      %s56 = sadd.s32 %s55, 1
      %s57 = scalar_select %p54, %s55, %s56
      %p60 = pneg %p54
      %p61 = scmp.eq.s32.totalorder %s19, 3
      %p62 = por %p60, %p61
      %p63 = scmp.ne.s32.totalorder %s55, %s58
      %p64 = scmp.eq.s32.totalorder %s19, 0
      %p65 = por %p63, %p64
      %p66 = scmp.ne.s32.totalorder %s55, %s58
      %p67 = scmp.eq.s32.totalorder %s24, 3
      %p68 = por %p66, %p67
      %p69 = scmp.ne.s32.totalorder %s58, %s59
      %p70 = scmp.eq.s32.totalorder %s24, 0
      %p71 = por %p69, %p70
      %p72 = scmp.ne.s32.totalorder %s58, %s59
      %p73 = scmp.eq.s32.totalorder %s25, 3
      %p74 = por %p72, %p73
      %p76 = scmp.ne.s32.totalorder %s59, %s75
      %p77 = scmp.eq.s32.totalorder %s25, 0
      %p78 = por %p76, %p77
      %s80 = sadd.s32 %s79, 1
      %p83 = scmp.eq.s32.totalorder %s19, 3
      %p84 = scmp.ne.s32.totalorder %s79, %s81
      %p85 = scmp.eq.s32.totalorder %s19, 0
      %p86 = por %p84, %p85
      %p87 = scmp.ne.s32.totalorder %s79, %s81
      %p88 = scmp.eq.s32.totalorder %s24, 3
      %p89 = por %p87, %p88
      %p90 = scmp.ne.s32.totalorder %s81, %s82
      %p91 = scmp.eq.s32.totalorder %s24, 0
      %p92 = por %p90, %p91
      %p93 = scmp.ne.s32.totalorder %s81, %s82
      %p94 = scmp.eq.s32.totalorder %s25, 3
      %p95 = por %p93, %p94
      %p97 = scmp.ne.s32.totalorder %s82, %s96
      %p98 = scmp.eq.s32.totalorder %s25, 0
      %p99 = por %p97, %p98
      %s101 = sadd.s32 %s100, 1
      %p104 = scmp.eq.s32.totalorder %s19, 3
      %p105 = scmp.ne.s32.totalorder %s100, %s102
      %p106 = scmp.eq.s32.totalorder %s19, 0
      %p107 = por %p105, %p106
      %p108 = scmp.ne.s32.totalorder %s100, %s102
      %p109 = scmp.eq.s32.totalorder %s24, 3
      %p110 = por %p108, %p109
      %p111 = scmp.ne.s32.totalorder %s102, %s103
      %p112 = scmp.eq.s32.totalorder %s24, 0
      %p113 = por %p111, %p112
      %p114 = scmp.ne.s32.totalorder %s102, %s103
      %p115 = scmp.eq.s32.totalorder %s25, 3
      %p116 = por %p114, %p115
      %p118 = scmp.ne.s32.totalorder %s103, %s117
      %p119 = scmp.eq.s32.totalorder %s25, 0
      %p120 = por %p118, %p119
      %s122 = sadd.s32 %s121, 1
      %p125 = scmp.eq.s32.totalorder %s19, 3
      %p126 = scmp.ne.s32.totalorder %s121, %s123
      %p127 = scmp.eq.s32.totalorder %s19, 0
      %p128 = por %p126, %p127
      %p129 = scmp.ne.s32.totalorder %s121, %s123
      %p130 = scmp.eq.s32.totalorder %s24, 3
      %p131 = por %p129, %p130
      %p132 = scmp.ne.s32.totalorder %s123, %s124
      %p133 = scmp.eq.s32.totalorder %s24, 0
      %p134 = por %p132, %p133
      %p135 = scmp.ne.s32.totalorder %s123, %s124
      %p136 = scmp.eq.s32.totalorder %s25, 3
      %p137 = por %p135, %p136
      %p139 = scmp.ne.s32.totalorder %s124, %s138
      %p140 = scmp.eq.s32.totalorder %s25, 0
      %p141 = por %p139, %p140
      %s143 = sadd.s32 %s142, 1
      %p146 = scmp.eq.s32.totalorder %s19, 3
      %p147 = scmp.ne.s32.totalorder %s142, %s144
      %p148 = scmp.eq.s32.totalorder %s19, 0
      %p149 = por %p147, %p148
      %p150 = scmp.ne.s32.totalorder %s142, %s144
      %p151 = scmp.eq.s32.totalorder %s24, 3
      %p152 = por %p150, %p151
      %p153 = scmp.ne.s32.totalorder %s144, %s145
      %p154 = scmp.eq.s32.totalorder %s24, 0
      %p155 = por %p153, %p154
      %p156 = scmp.ne.s32.totalorder %s144, %s145
      %p157 = scmp.eq.s32.totalorder %s25, 3
      %p158 = por %p156, %p157
      %p160 = scmp.ne.s32.totalorder %s145, %s159
      %p161 = scmp.eq.s32.totalorder %s25, 0
      %p162 = por %p160, %p161
      %s163 = ssub.s32 %s19, %s26
      %p164 = scmp.eq.s32.totalorder %s163, 0
      %s166 = sadd.s32 %s165, 1
      %s167 = scalar_select %p164, %s165, %s166
      %p170 = pneg %p164
      %p171 = scmp.eq.s32.totalorder %s19, 3
      %p172 = por %p170, %p171
      %p173 = scmp.ne.s32.totalorder %s165, %s168
      %p174 = scmp.eq.s32.totalorder %s19, 0
      %p175 = por %p173, %p174
      %p176 = scmp.ne.s32.totalorder %s165, %s168
      %p177 = scmp.eq.s32.totalorder %s24, 3
      %p178 = por %p176, %p177
      %p179 = scmp.ne.s32.totalorder %s168, %s169
      %p180 = scmp.eq.s32.totalorder %s24, 0
      %p181 = por %p179, %p180
      %p182 = scmp.ne.s32.totalorder %s168, %s169
      %p183 = scmp.eq.s32.totalorder %s25, 3
      %p184 = por %p182, %p183
      %p186 = scmp.ne.s32.totalorder %s169, %s185
      %p187 = scmp.eq.s32.totalorder %s25, 0
      %p188 = por %p186, %p187
      %p189 = scmp.le.s32.totalorder 1, %s19
      %p190 = scmp.lt.s32.totalorder %s19, 5
      %p191 = pnand %p189, %p190
      %p192 = pneg %p191
      // Predicated region
      $region9: #{dblock_gcn_forward.1} parent=5 // pred_check
        _
      $region10: #{dblock_gcn_forward.1} parent=5 // pred_check_branch
        %194 = sbr.rel (%p191) target = $region12
      $region11: #{dblock_gcn_forward.1} parent=5 // pred_region
        %s195 = ssub.s32 %s19, 1
        // Predicated region
        $region13: #{dblock_gcn_forward.1} parent=11 // pred_check
          %p196 = pneg %p92
        $region14: #{dblock_gcn_forward.1} parent=11 // pred_check_branch
          %198 = sbr.rel (%p196) target = $region16
        $region15: #{dblock_gcn_forward.1} parent=11 // pred_region
          %s200 = ssub.s32 256, 256
          %201 = vsyncadd [#allocation5], %s200
          %s202 = sshll.u32 [#allocation6], 4
          %s203 = int_to_ptr.vmem [resolvable:$true] %s202
          %208 = dma.hbm_to_vmem [thread:$0]  %s2, 256, %s203, [#allocation5], 128, 128, 8
        $region16: #{dblock_gcn_forward.1} parent=11 // pred_fallthru
          _
        // Predicated region
        $region17: #{dblock_gcn_forward.1} parent=11 // pred_check
          %p209 = pneg %p113
        $region18: #{dblock_gcn_forward.1} parent=11 // pred_check_branch
          %211 = sbr.rel (%p209) target = $region20
        $region19: #{dblock_gcn_forward.1} parent=11 // pred_region
          _
        $region20: #{dblock_gcn_forward.1} parent=11 // pred_fallthru
          _
        // Predicated region
        $region21: #{dblock_gcn_forward.1} parent=11 // pred_check
          %p212 = pneg %p134
        $region22: #{dblock_gcn_forward.1} parent=11 // pred_check_branch
          %214 = sbr.rel (%p212) target = $region24
        $region23: #{dblock_gcn_forward.1} parent=11 // pred_region
          %s216 = ssub.s32 2048, 2048
          %217 = vsyncadd [#allocation8], %s216
          %s218 = sshll.u32 [#allocation7], 4
          %s219 = int_to_ptr.vmem [resolvable:$true] %s218
          %224 = dma.hbm_to_vmem [thread:$0]  %s4, 2048, %s219, [#allocation8], 128, 128, 8
        $region24: #{dblock_gcn_forward.1} parent=11 // pred_fallthru
          _
        // Predicated region
        $region25: #{dblock_gcn_forward.1} parent=11 // pred_check
          %p225 = pneg %p155
        $region26: #{dblock_gcn_forward.1} parent=11 // pred_check_branch
          %227 = sbr.rel (%p225) target = $region28
        $region27: #{dblock_gcn_forward.1} parent=11 // pred_region
          _
        $region28: #{dblock_gcn_forward.1} parent=11 // pred_fallthru
          _
      $region12: #{dblock_gcn_forward.1} parent=5 // pred_fallthru
        _
      %p228 = scmp.lt.s32.totalorder %s19, 4
      // Predicated region
      $region29: #{dblock_gcn_forward.1} parent=5 // pred_check
        %p229 = pneg %p228
      $region30: #{dblock_gcn_forward.1} parent=5 // pred_check_branch
        %231 = sbr.rel (%p229) target = $region32
      $region31: #{dblock_gcn_forward.1} parent=5 // pred_region
        // Predicated region
        $region33: #{dblock_gcn_forward.1} parent=31 // pred_check
          %p232 = pneg %p39
        $region34: #{dblock_gcn_forward.1} parent=31 // pred_check_branch
          %234 = sbr.rel (%p232) target = $region36
        $region35: #{dblock_gcn_forward.1} parent=31 // pred_region
          %s235 = sand.u32 %s29, 1
          %s236 = scalar_lea.sflag [#allocation3], %s235
          %s237 = sand.u32 %s29, 1
          %s238 = smul.addr %s237, 8
          %s239 = scalar_lea.vmem [#allocation2], %s238
          %s241 = ssub.s32 128, 128
          %242 = vsyncadd %s236, %s241
          %s243 = smul.addr %s19, 128
          %s244 = scalar_lea.hbm %s0, %s243
          %s246 = sshll.u32 %s239, 4
          %s247 = int_to_ptr.vmem [resolvable:$true] %s246
          %249 = dma.hbm_to_vmem [thread:$0]  %s244, 128, %s247, %s236
        $region36: #{dblock_gcn_forward.1} parent=31 // pred_fallthru
          _
        // Predicated region
        $region37: #{dblock_gcn_forward.1} parent=31 // pred_check
          %p250 = pneg %p65
        $region38: #{dblock_gcn_forward.1} parent=31 // pred_check_branch
          %252 = sbr.rel (%p250) target = $region40
        $region39: #{dblock_gcn_forward.1} parent=31 // pred_region
          %s253 = sand.u32 %s19, 1
          %s254 = scalar_lea.sflag [#allocation5], %s253
          %s255 = sand.u32 %s55, 1
          %s256 = smul.addr %s255, 8
          %s257 = scalar_lea.vmem [#allocation4], %s256
          %s259 = ssub.s32 128, 128
          %260 = vsyncadd %s254, %s259
          %s261 = smul.addr %s19, 128
          %s262 = scalar_lea.hbm %s1, %s261
          %s264 = sshll.u32 %s257, 4
          %s265 = int_to_ptr.vmem [resolvable:$true] %s264
          %267 = dma.hbm_to_vmem [thread:$0]  %s262, 128, %s265, %s254
        $region40: #{dblock_gcn_forward.1} parent=31 // pred_fallthru
          _
      $region32: #{dblock_gcn_forward.1} parent=5 // pred_fallthru
        _
      %p268 = scmp.le.s32.totalorder 1, %s19
      %p269 = scmp.lt.s32.totalorder %s19, 5
      %p270 = pnand %p268, %p269
      %p271 = pneg %p270
      // Predicated region
      $region41: #{dblock_gcn_forward.1} parent=5 // pred_check
        _
      $region42: #{dblock_gcn_forward.1} parent=5 // pred_check_branch
        %273 = sbr.rel (%p270) target = $region44
      $region43: #{dblock_gcn_forward.1} parent=5 // pred_region
        %s274 = ssub.s32 %s19, 1
        %s275 = sand.u32 %s32, 1
        %s276 = scalar_lea.sflag [#allocation3], %s275
        %s277 = sand.u32 %s32, 1
        %s278 = smul.addr %s277, 8
        %s279 = scalar_lea.vmem [#allocation2], %s278
        // Predicated region
        $region45: #{dblock_gcn_forward.1} parent=43 // pred_check
          %p280 = pneg %p45
        $region46: #{dblock_gcn_forward.1} parent=43 // pred_check_branch
          %282 = sbr.rel (%p280) target = $region48
        $region47: #{dblock_gcn_forward.1} parent=43 // pred_region
          %283 = dma.done %s276, 128
        $region48: #{dblock_gcn_forward.1} parent=43 // pred_fallthru
          _
        %s284 = sand.u32 %s24, 1
        %s285 = scalar_lea.sflag [#allocation5], %s284
        %s286 = sand.u32 %s58, 1
        %s287 = smul.addr %s286, 8
        %s288 = scalar_lea.vmem [#allocation4], %s287
        // Predicated region
        $region49: #{dblock_gcn_forward.1} parent=43 // pred_check
          %p289 = pneg %p71
        $region50: #{dblock_gcn_forward.1} parent=43 // pred_check_branch
          %291 = sbr.rel (%p289) target = $region52
        $region51: #{dblock_gcn_forward.1} parent=43 // pred_region
          %292 = dma.done %s285, 128
        $region52: #{dblock_gcn_forward.1} parent=43 // pred_fallthru
          _
        // Predicated region
        $region53: #{dblock_gcn_forward.1} parent=43 // pred_check
          %p293 = pneg %p92
        $region54: #{dblock_gcn_forward.1} parent=43 // pred_check_branch
          %295 = sbr.rel (%p293) target = $region56
        $region55: #{dblock_gcn_forward.1} parent=43 // pred_region
          %296 = dma.done [#allocation5], 256
        $region56: #{dblock_gcn_forward.1} parent=43 // pred_fallthru
          _
        // Predicated region
        $region57: #{dblock_gcn_forward.1} parent=43 // pred_check
          %p297 = pneg %p134
        $region58: #{dblock_gcn_forward.1} parent=43 // pred_check_branch
          %299 = sbr.rel (%p297) target = $region60
        $region59: #{dblock_gcn_forward.1} parent=43 // pred_region
          %300 = dma.done [#allocation8], 2048
        $region60: #{dblock_gcn_forward.1} parent=43 // pred_fallthru
          _
        %s301 = sand.u32 %s32, 1
        %s302 = scalar_lea.sflag [#allocation3], %s301
        %s303 = sand.u32 %s32, 1
        %s304 = smul.addr %s303, 8
        %s305 = scalar_lea.vmem [#allocation2], %s304
        %p306 = pneg %p45
        %p307 = pneg %p42
        %s308 = sand.u32 %s24, 1
        %s309 = scalar_lea.sflag [#allocation5], %s308
        %s310 = sand.u32 %s58, 1
        %s311 = smul.addr %s310, 8
        %s312 = scalar_lea.vmem [#allocation4], %s311
        %p313 = pneg %p71
        %p314 = pneg %p68
        %p315 = pneg %p92
        %p316 = pneg %p89
        %p317 = pneg %p113
        %p318 = pneg %p110
        %p319 = pneg %p134
        %p320 = pneg %p131
        %p321 = pneg %p155
        %p322 = pneg %p152
        %p323 = pneg %p181
        %p324 = pneg %p178
        %p325 = scmp.lt.s32.totalorder %s24, 3
        %s326 = scalar_select %p325, %s24, 3
        %s327 = smul.addr %s326, 8
        %s328 = scalar_lea.vmem %s6, %s327
        %p329 = scmp.lt.s32.totalorder %s24, 3
        %s330 = scalar_select %p329, %s24, 3
        %s331 = smul.addr %s330, 8
        %s332 = scalar_lea.vmem %s6, %s331
        %v333 = vld [vmem:[%s279] sm:$0xff]
        %v334 = vld [vmem:[%s288] sm:$0xff]
        %vm335 = vcmask 64512
        %v337 = vsel %vm335, %v334, 0
        %339 = vmatprep.subr.mxu0 0.0
        %340 = vmatpush1.msra.mxu0 %v333
        %341 = vmatprep.subr.mxu0 0.0
        %342 = vmatpush1.msra.mxu0 0.0
        %343 = vmatprep.subr.mxu0 0.0
        %344 = vmatpush1.msra.mxu0 0.0
        %345 = vmatprep.subr.mxu0 0.0
        %346 = vmatpush1.msra.mxu0 0.0
        %347 = vmatprep.subr.mxu0 0.0
        %348 = vmatpush1.msra.mxu0 0.0
        %349 = vmatprep.subr.mxu0 0.0
        %350 = vmatpush1.msra.mxu0 0.0
        %351 = vmatprep.subr.mxu0 0.0
        %352 = vmatpush1.msra.mxu0 0.0
        %353 = vmatprep.subr.mxu0 0.0
        %354 = vmatpush1.msra.mxu0 0.0
        %355 = vmatprep.subr.mxu0 0.0
        %356 = vmatpush1.msra.mxu0 0.0
        %357 = vmatprep.subr.mxu0 0.0
        %358 = vmatpush1.msra.mxu0 0.0
        %359 = vmatprep.subr.mxu0 0.0
        %360 = vmatpush1.msra.mxu0 0.0
        %361 = vmatprep.subr.mxu0 0.0
        %362 = vmatpush1.msra.mxu0 0.0
        %363 = vmatprep.subr.mxu0 0.0
        %364 = vmatpush1.msra.mxu0 0.0
        %365 = vmatprep.subr.mxu0 0.0
        %366 = vmatpush1.msra.mxu0 0.0
        %367 = vmatprep.subr.mxu0 0.0
        %368 = vmatpush1.msra.mxu0 0.0
        %369 = vmatprep.subr.mxu0 0.0
        %370 = vmatpush1.msra.mxu0 0.0
        %371 = vmatprep.subr.mxu0 0.0
        %372 = vmatpush1.msra.mxu0 0.0
        %373 = vmatprep.subr.mxu0 0.0
        %374 = vmatpush1.msra.mxu0 0.0
        %375 = vmatprep.subr.mxu0 0.0
        %376 = vmatpush1.msra.mxu0 0.0
        %377 = vmatprep.subr.mxu0 0.0
        %378 = vmatpush1.msra.mxu0 0.0
        %379 = vmatprep.subr.mxu0 0.0
        %380 = vmatpush1.msra.mxu0 0.0
        %381 = vmatprep.subr.mxu0 0.0
        %382 = vmatpush1.msra.mxu0 0.0
        %383 = vmatprep.subr.mxu0 0.0
        %384 = vmatpush1.msra.mxu0 0.0
        %385 = vmatprep.subr.mxu0 0.0
        %386 = vmatpush1.msra.mxu0 0.0
        %387 = vmatprep.subr.mxu0 0.0
        %388 = vmatpush1.msra.mxu0 0.0
        %389 = vmatprep.subr.mxu0 0.0
        %390 = vmatpush1.msra.mxu0 0.0
        %391 = vmatprep.subr.mxu0 0.0
        %392 = vmatpush1.msra.mxu0 0.0
        %393 = vmatprep.subr.mxu0 0.0
        %394 = vmatpush1.msra.mxu0 0.0
        %395 = vmatprep.subr.mxu0 0.0
        %396 = vmatpush1.msra.mxu0 0.0
        %397 = vmatprep.subr.mxu0 0.0
        %398 = vmatpush1.msra.mxu0 0.0
        %399 = vmatprep.subr.mxu0 0.0
        %400 = vmatpush1.msra.mxu0 0.0
        %401 = vmatprep.subr.mxu0 0.0
        %402 = vmatpush1.msra.mxu0 0.0
        %403 = vmatprep.mubr.f32.mxu0 0.0
        %404 = vmatmul.mubr.f32.gmra.mrb[0].mxu0 %v337
        %v405 = vpop.f32.mrb[0].mxu0
        %v406 = vadd.f32 0.0, %v405
        %v407 = vpop.f32.mrb[0].mxu0
        %408 = vdwg.mxu0
        %v409 = vld [vmem:[#allocation6] sm:$0xff]
        %v410 = vld [vmem:[#allocation6 + $0x8] sm:$0xff]
        %v411 = vld [vmem:[%s3] sm:$0x1]
        %v413 = vlaneseq
        %v414 = vshrl.u32 %v413, 7
        %v415 = vsub.s32 0, %v414
        %v416 = vrot.slane %v411, %v415
        %vm418 = vcmask 130048
        %v420 = vsel %vm418, %v406, 0
        %422 = vmatprep.subr.mxu0 0.0
        %423 = vmatpush1.msra.mxu0 %v409
        %424 = vmatprep.subr.mxu0 0.0
        %425 = vmatpush1.msra.mxu0 %v410
        %426 = vmatprep.subr.mxu0 0.0
        %427 = vmatpush1.msra.mxu0 0.0
        %428 = vmatprep.subr.mxu0 0.0
        %429 = vmatpush1.msra.mxu0 0.0
        %430 = vmatprep.subr.mxu0 0.0
        %431 = vmatpush1.msra.mxu0 0.0
        %432 = vmatprep.subr.mxu0 0.0
        %433 = vmatpush1.msra.mxu0 0.0
        %434 = vmatprep.subr.mxu0 0.0
        %435 = vmatpush1.msra.mxu0 0.0
        %436 = vmatprep.subr.mxu0 0.0
        %437 = vmatpush1.msra.mxu0 0.0
        %438 = vmatprep.subr.mxu0 0.0
        %439 = vmatpush1.msra.mxu0 0.0
        %440 = vmatprep.subr.mxu0 0.0
        %441 = vmatpush1.msra.mxu0 0.0
        %442 = vmatprep.subr.mxu0 0.0
        %443 = vmatpush1.msra.mxu0 0.0
        %444 = vmatprep.subr.mxu0 0.0
        %445 = vmatpush1.msra.mxu0 0.0
        %446 = vmatprep.subr.mxu0 0.0
        %447 = vmatpush1.msra.mxu0 0.0
        %448 = vmatprep.subr.mxu0 0.0
        %449 = vmatpush1.msra.mxu0 0.0
        %450 = vmatprep.subr.mxu0 0.0
        %451 = vmatpush1.msra.mxu0 0.0
        %452 = vmatprep.subr.mxu0 0.0
        %453 = vmatpush1.msra.mxu0 0.0
        %454 = vmatprep.subr.mxu0 0.0
        %455 = vmatpush1.msra.mxu0 0.0
        %456 = vmatprep.subr.mxu0 0.0
        %457 = vmatpush1.msra.mxu0 0.0
        %458 = vmatprep.subr.mxu0 0.0
        %459 = vmatpush1.msra.mxu0 0.0
        %460 = vmatprep.subr.mxu0 0.0
        %461 = vmatpush1.msra.mxu0 0.0
        %462 = vmatprep.subr.mxu0 0.0
        %463 = vmatpush1.msra.mxu0 0.0
        %464 = vmatprep.subr.mxu0 0.0
        %465 = vmatpush1.msra.mxu0 0.0
        %466 = vmatprep.subr.mxu0 0.0
        %467 = vmatpush1.msra.mxu0 0.0
        %468 = vmatprep.subr.mxu0 0.0
        %469 = vmatpush1.msra.mxu0 0.0
        %470 = vmatprep.subr.mxu0 0.0
        %471 = vmatpush1.msra.mxu0 0.0
        %472 = vmatprep.subr.mxu0 0.0
        %473 = vmatpush1.msra.mxu0 0.0
        %474 = vmatprep.subr.mxu0 0.0
        %475 = vmatpush1.msra.mxu0 0.0
        %476 = vmatprep.subr.mxu0 0.0
        %477 = vmatpush1.msra.mxu0 0.0
        %478 = vmatprep.subr.mxu0 0.0
        %479 = vmatpush1.msra.mxu0 0.0
        %480 = vmatprep.subr.mxu0 0.0
        %481 = vmatpush1.msra.mxu0 0.0
        %482 = vmatprep.subr.mxu0 0.0
        %483 = vmatpush1.msra.mxu0 0.0
        %484 = vmatprep.subr.mxu0 0.0
        %485 = vmatpush1.msra.mxu0 0.0
        %486 = vmatprep.mubr.f32.mxu0 0.0
        %487 = vmatmul.mubr.f32.gmra.mrb[0].mxu0 %v420
        %v488 = vpop.f32.mrb[0].mxu0
        %v489 = vadd.f32 %v416, %v488
        %v490 = vpop.f32.mrb[0].mxu0
        %491 = vdwg.mxu0
        %v492 = vlaneseq
        %v493 = vand.u32 %v492, 127
        %vm494 = vcmp.lt.s32.totalorder %v493, 64
        %v495 = vmul.f32 %v489, 0.5
        %v496 = vsel %vm494, %v489, %v495
        %v497 = vtanh.pop %v496
        %v498 = vmul.f32 %v497, 0.5
        %v499 = vadd.f32 %v498, 0.5
        %v500 = vsel %vm494, %v497, %v499
        %501 = vrot.lane.b32.xlu0 %v500, 64
        %v502 = vpop.permute.xlu0 %501
        %v503 = vmul.f32 %v500, %v502
        %v504 = vld [vmem:[#allocation7] sm:$0xff]
        %v505 = vld [vmem:[#allocation7 + $0x8] sm:$0xff]
        %v506 = vld [vmem:[#allocation7 + $0x10] sm:$0xff]
        %v507 = vld [vmem:[#allocation7 + $0x18] sm:$0xff]
        %v508 = vld [vmem:[#allocation7 + $0x20] sm:$0xff]
        %v509 = vld [vmem:[#allocation7 + $0x28] sm:$0xff]
        %v510 = vld [vmem:[#allocation7 + $0x30] sm:$0xff]
        %v511 = vld [vmem:[#allocation7 + $0x38] sm:$0xff]
        %v512 = vld [vmem:[#allocation7 + $0x40] sm:$0xff]
        %v513 = vld [vmem:[#allocation7 + $0x48] sm:$0xff]
        %v514 = vld [vmem:[#allocation7 + $0x50] sm:$0xff]
        %v515 = vld [vmem:[#allocation7 + $0x58] sm:$0xff]
        %v516 = vld [vmem:[#allocation7 + $0x60] sm:$0xff]
        %v517 = vld [vmem:[#allocation7 + $0x68] sm:$0xff]
        %v518 = vld [vmem:[#allocation7 + $0x70] sm:$0xff]
        %v519 = vld [vmem:[#allocation7 + $0x78] sm:$0xff]
        %520 = vmatprep.subr.mxu0 0.0
        %521 = vmatpush1.msra.mxu0 %v504
        %522 = vmatprep.subr.mxu0 0.0
        %523 = vmatpush1.msra.mxu0 %v505
        %524 = vmatprep.subr.mxu0 0.0
        %525 = vmatpush1.msra.mxu0 %v506
        %526 = vmatprep.subr.mxu0 0.0
        %527 = vmatpush1.msra.mxu0 %v507
        %528 = vmatprep.subr.mxu0 0.0
        %529 = vmatpush1.msra.mxu0 %v508
        %530 = vmatprep.subr.mxu0 0.0
        %531 = vmatpush1.msra.mxu0 %v509
        %532 = vmatprep.subr.mxu0 0.0
        %533 = vmatpush1.msra.mxu0 %v510
        %534 = vmatprep.subr.mxu0 0.0
        %535 = vmatpush1.msra.mxu0 %v511
        %536 = vmatprep.subr.mxu0 0.0
        %537 = vmatpush1.msra.mxu0 %v512
        %538 = vmatprep.subr.mxu0 0.0
        %539 = vmatpush1.msra.mxu0 %v513
        %540 = vmatprep.subr.mxu0 0.0
        %541 = vmatpush1.msra.mxu0 %v514
        %542 = vmatprep.subr.mxu0 0.0
        %543 = vmatpush1.msra.mxu0 %v515
        %544 = vmatprep.subr.mxu0 0.0
        %545 = vmatpush1.msra.mxu0 %v516
        %546 = vmatprep.subr.mxu0 0.0
        %547 = vmatpush1.msra.mxu0 %v517
        %548 = vmatprep.subr.mxu0 0.0
        %549 = vmatpush1.msra.mxu0 %v518
        %550 = vmatprep.subr.mxu0 0.0
        %551 = vmatpush1.msra.mxu0 %v519
        %552 = vmatprep.subr.mxu0 0.0
        %553 = vmatpush1.msra.mxu0 0.0
        %554 = vmatprep.subr.mxu0 0.0
        %555 = vmatpush1.msra.mxu0 0.0
        %556 = vmatprep.subr.mxu0 0.0
        %557 = vmatpush1.msra.mxu0 0.0
        %558 = vmatprep.subr.mxu0 0.0
        %559 = vmatpush1.msra.mxu0 0.0
        %560 = vmatprep.subr.mxu0 0.0
        %561 = vmatpush1.msra.mxu0 0.0
        %562 = vmatprep.subr.mxu0 0.0
        %563 = vmatpush1.msra.mxu0 0.0
        %564 = vmatprep.subr.mxu0 0.0
        %565 = vmatpush1.msra.mxu0 0.0
        %566 = vmatprep.subr.mxu0 0.0
        %567 = vmatpush1.msra.mxu0 0.0
        %568 = vmatprep.subr.mxu0 0.0
        %569 = vmatpush1.msra.mxu0 0.0
        %570 = vmatprep.subr.mxu0 0.0
        %571 = vmatpush1.msra.mxu0 0.0
        %572 = vmatprep.subr.mxu0 0.0
        %573 = vmatpush1.msra.mxu0 0.0
        %574 = vmatprep.subr.mxu0 0.0
        %575 = vmatpush1.msra.mxu0 0.0
        %576 = vmatprep.subr.mxu0 0.0
        %577 = vmatpush1.msra.mxu0 0.0
        %578 = vmatprep.subr.mxu0 0.0
        %579 = vmatpush1.msra.mxu0 0.0
        %580 = vmatprep.subr.mxu0 0.0
        %581 = vmatpush1.msra.mxu0 0.0
        %582 = vmatprep.subr.mxu0 0.0
        %583 = vmatpush1.msra.mxu0 0.0
        %584 = vmatprep.mubr.f32.mxu0 0.0
        %585 = vmatmul.mubr.f32.gmra.mrb[0].mxu0 %v503
        %v586 = vpop.f32.mrb[0].mxu0
        %v587 = vadd.f32 0.0, %v586
        %v588 = vpop.f32.mrb[0].mxu0
        %589 = vdwg.mxu0
        %v590 = vld [vmem:[%s5] sm:$0x1]
        %v592 = vlaneseq
        %v593 = vshrl.u32 %v592, 7
        %v594 = vsub.s32 0, %v593
        %v595 = vrot.slane %v590, %v594
        %597 = vmatprep.subr.mxu0 0.0
        %598 = vmatpush1.msra.mxu0 %v587
        %599 = vmatprep.subr.mxu0 0.0
        %600 = vmatpush1.msra.mxu0 0.0
        %601 = vmatprep.subr.mxu0 0.0
        %602 = vmatpush1.msra.mxu0 0.0
        %603 = vmatprep.subr.mxu0 0.0
        %604 = vmatpush1.msra.mxu0 0.0
        %605 = vmatprep.subr.mxu0 0.0
        %606 = vmatpush1.msra.mxu0 0.0
        %607 = vmatprep.subr.mxu0 0.0
        %608 = vmatpush1.msra.mxu0 0.0
        %609 = vmatprep.subr.mxu0 0.0
        %610 = vmatpush1.msra.mxu0 0.0
        %611 = vmatprep.subr.mxu0 0.0
        %612 = vmatpush1.msra.mxu0 0.0
        %613 = vmatprep.subr.mxu0 0.0
        %614 = vmatpush1.msra.mxu0 0.0
        %615 = vmatprep.subr.mxu0 0.0
        %616 = vmatpush1.msra.mxu0 0.0
        %617 = vmatprep.subr.mxu0 0.0
        %618 = vmatpush1.msra.mxu0 0.0
        %619 = vmatprep.subr.mxu0 0.0
        %620 = vmatpush1.msra.mxu0 0.0
        %621 = vmatprep.subr.mxu0 0.0
        %622 = vmatpush1.msra.mxu0 0.0
        %623 = vmatprep.subr.mxu0 0.0
        %624 = vmatpush1.msra.mxu0 0.0
        %625 = vmatprep.subr.mxu0 0.0
        %626 = vmatpush1.msra.mxu0 0.0
        %627 = vmatprep.subr.mxu0 0.0
        %628 = vmatpush1.msra.mxu0 0.0
        %629 = vmatprep.subr.mxu0 0.0
        %630 = vmatpush1.msra.mxu0 0.0
        %631 = vmatprep.subr.mxu0 0.0
        %632 = vmatpush1.msra.mxu0 0.0
        %633 = vmatprep.subr.mxu0 0.0
        %634 = vmatpush1.msra.mxu0 0.0
        %635 = vmatprep.subr.mxu0 0.0
        %636 = vmatpush1.msra.mxu0 0.0
        %637 = vmatprep.subr.mxu0 0.0
        %638 = vmatpush1.msra.mxu0 0.0
        %639 = vmatprep.subr.mxu0 0.0
        %640 = vmatpush1.msra.mxu0 0.0
        %641 = vmatprep.subr.mxu0 0.0
        %642 = vmatpush1.msra.mxu0 0.0
        %643 = vmatprep.subr.mxu0 0.0
        %644 = vmatpush1.msra.mxu0 0.0
        %645 = vmatprep.subr.mxu0 0.0
        %646 = vmatpush1.msra.mxu0 0.0
        %647 = vmatprep.subr.mxu0 0.0
        %648 = vmatpush1.msra.mxu0 0.0
        %649 = vmatprep.subr.mxu0 0.0
        %650 = vmatpush1.msra.mxu0 0.0
        %651 = vmatprep.subr.mxu0 0.0
        %652 = vmatpush1.msra.mxu0 0.0
        %653 = vmatprep.subr.mxu0 0.0
        %654 = vmatpush1.msra.mxu0 0.0
        %655 = vmatprep.subr.mxu0 0.0
        %656 = vmatpush1.msra.mxu0 0.0
        %657 = vmatprep.subr.mxu0 0.0
        %658 = vmatpush1.msra.mxu0 0.0
        %659 = vmatprep.subr.mxu0 0.0
        %660 = vmatpush1.msra.mxu0 0.0
        %661 = vmatprep.mubr.f32.mxu0 0.0
        %662 = vmatmul.mubr.f32.gmra.mrb[0].mxu0 %v337
        %v663 = vpop.f32.mrb[0].mxu0
        %v664 = vadd.f32 %v595, %v663
        %v665 = vpop.f32.mrb[0].mxu0
        %666 = vdwg.mxu0
        %667 = vst [vmem:[%s332] sm:$0xff] %v664
        %p668 = scmp.lt.s32.totalorder %s24, 3
        %s669 = scalar_select %p668, %s24, 3
        %s670 = smul.addr %s669, 8
        %s671 = scalar_lea.vmem %s6, %s670
        // Predicated region
        $region61: #{dblock_gcn_forward.1} parent=43 // pred_check
          %p672 = pneg %p178
        $region62: #{dblock_gcn_forward.1} parent=43 // pred_check_branch
          %674 = sbr.rel (%p672) target = $region64
        $region63: #{dblock_gcn_forward.1} parent=43 // pred_region
          _
        $region64: #{dblock_gcn_forward.1} parent=43 // pred_fallthru
          _
      $region44: #{dblock_gcn_forward.1} parent=5 // pred_fallthru
        _
      %p675 = scmp.le.s32.totalorder 2, %s19
      // Predicated region
      $region65: #{dblock_gcn_forward.1} parent=5 // pred_check
        %p676 = pneg %p675
      $region66: #{dblock_gcn_forward.1} parent=5 // pred_check_branch
        %678 = sbr.rel (%p676) target = $region68
      $region67: #{dblock_gcn_forward.1} parent=5 // pred_region
        %s679 = ssub.s32 %s19, 2
        // Predicated region
        $region69: #{dblock_gcn_forward.1} parent=67 // pred_check
          %p680 = pneg %p184
        $region70: #{dblock_gcn_forward.1} parent=67 // pred_check_branch
          %682 = sbr.rel (%p680) target = $region72
        $region71: #{dblock_gcn_forward.1} parent=67 // pred_region
          %p683 = scmp.lt.s32.totalorder %s25, 3
          %s684 = scalar_select %p683, %s25, 3
          %s685 = smul.addr %s684, 8
          %s686 = scalar_lea.vmem %s6, %s685
        $region72: #{dblock_gcn_forward.1} parent=67 // pred_fallthru
          _
      $region68: #{dblock_gcn_forward.1} parent=5 // pred_fallthru
        _
    $region6: #{dblock_gcn_forward.1} parent=1 // loop_footer
      %s23 = sadd.s32 1, %s19
    $region7: #{dblock_gcn_forward.1} parent=1 // loop_footer_branch
      %18 = sbr.rel target = $region3
    $region8: #{dblock_gcn_forward.1} parent=1 // loop_exit
      _
    %687 = vsyncpa [#allocation3], 1
    %s688 = scalar_lea.sflag [#allocation3], 1
    %689 = vsyncpa %s688, 1
    %690 = vsyncpa [#allocation5], 1
    %s691 = scalar_lea.sflag [#allocation5], 1
    %692 = vsyncpa %s691, 1
    %693 = vsyncpa [#allocation8], 1

</llo_original>
